<compile_context>
chip_gen: v5e
topology: v5e:2x2
jax: 0.10.0
libtpu: 0.0.40
codegen_flags: <defaults>
</compile_context>

<pallas_src>
import functools
import math

import jax
import jax.numpy as jnp
from jax.experimental import pallas as pl
from jax.experimental.pallas import tpu as pltpu


def _spatial_gate_kernel(w_ref, b_ref, x_ref, o_ref, *, C, H, W, K, TN):
    # w_ref: SMEM (C*K*K,) f32 -- spatially flipped ConvTranspose2d weights
    # b_ref: SMEM (1,)      f32
    # x_ref: VMEM (TN, C*H*W)  channel-major, spatial dims flattened into lanes
    # o_ref: VMEM (TN, H*W)
    HW = H * W

    # Per-channel planes, loaded once via 128-aligned static lane slices
    # (HW % 128 == 0 for typical feature maps; still correct otherwise).
    chans = [x_ref[:, c * HW:(c + 1) * HW].astype(jnp.float32) for c in range(C)]

    # Border masks, built once per grid step. Row masks need only flat-index
    # comparisons; the column index avoids integer mod when W is a power of 2.
    idx = jax.lax.broadcasted_iota(jnp.int32, (TN, HW), 1)
    col = (idx & (W - 1)) if (W & (W - 1)) == 0 else (idx % W)
    not_left = col != 0           # valid output cols when the tap has dx = -1
    not_right = col != W - 1      # valid output cols when the tap has dx = +1
    not_top = idx >= W            # valid output rows when the tap has dy = -1
    not_bottom = idx < HW - W     # valid output rows when the tap has dy = +1

    acc = jnp.full((TN, HW), b_ref[0], jnp.float32)
    for p in range(K):            # tap row offset (dy = p - 1)
        for q in range(K):        # tap col offset (dx = q - 1)
            # Channel-weighted sum on the UNSHIFTED planes (VPU) ...
            plane = chans[0] * w_ref[p * K + q]
            for c in range(1, C):
                plane = plane + chans[c] * w_ref[c * K * K + p * K + q]
            # ... then ONE lane rotation per tap (XLU): out[j] = in[j + d].
            d = (p - 1) * W + (q - 1)
            if d != 0:
                plane = pltpu.roll(plane, (-d) % HW, axis=1)
            # Zero output positions whose tap falls outside the image
            # (also kills the circular-wrap garbage from the rotation).
            mask = None
            if p == 0:
                mask = not_top
            elif p == K - 1:
                mask = not_bottom
            if q == 0:
                mask = not_left if mask is None else jnp.logical_and(mask, not_left)
            elif q == K - 1:
                mask = not_right if mask is None else jnp.logical_and(mask, not_right)
            if mask is not None:
                plane = jnp.where(mask, plane, 0.0)
            acc = acc + plane

    o_ref[...] = jax.nn.sigmoid(acc).astype(o_ref.dtype)


def _vmem_cap_bytes():
    try:
        return int(pltpu.get_tpu_info().vmem_capacity_bytes)
    except Exception:
        return 128 * 1024 * 1024


def _pick_tn(n_pad, c, hw, vmem_cap):
    """Largest multiple-of-8 divisor of n_pad whose working set fits the VMEM budget."""
    budget = min(40 << 20, max(8 << 20, vmem_cap // 3))
    # Double-buffered input+output blocks plus in-kernel live f32 planes.
    per_img = (3 * c + 8) * hw * 4
    cap_imgs = max(8, (budget // max(per_img, 1)) // 8 * 8)
    d = min(cap_imgs, n_pad)
    d -= d % 8
    while d >= 8:
        if n_pad % d == 0:
            return d
        d -= 8
    return 8


def spatial_gate(x, weight, bias):
    """x: (N, C, H, W); weight: (C, 1, 3, 3) ConvTranspose2d layout; bias: (1,)."""
    N, C, H, W = x.shape
    K = weight.shape[-1]
    assert weight.shape == (C, 1, K, K) and bias.shape == (1,)
    assert K == 3, "SpatialGate uses a fixed 3x3 kernel with padding=1"

    HW = H * W
    # ConvTranspose2d(stride=1, pad=1, k=3)  ==  Conv2d(flip(w), pad=1)
    w_flat = jnp.flip(weight[:, 0], axis=(-2, -1)).reshape(-1).astype(jnp.float32)

    # Lane-dense, channel-major input: (N, C*HW). Free contiguous reshape in HBM.
    x_flat = x.reshape(N, C * HW)

    # Pad the batch to a multiple of 8 so every vector op fills all 8 sublanes;
    # the padded rows are dropped after the call.
    n_pad = ((N + 7) // 8) * 8
    if n_pad != N:
        x_flat = jnp.pad(x_flat, ((0, n_pad - N), (0, 0)))

    vmem_cap = _vmem_cap_bytes()
    tn = _pick_tn(n_pad, C, HW, vmem_cap)
    grid = (n_pad // tn,)

    in_block = tn * C * HW * 4
    out_block = tn * HW * 4
    vmem_limit = int(min(vmem_cap // 2,
                         max(16 << 20, 4 * (in_block + out_block) + (4 << 20))))

    kernel = functools.partial(_spatial_gate_kernel, C=C, H=H, W=W, K=K, TN=tn)
    out = pl.pallas_call(
        kernel,
        out_shape=jax.ShapeDtypeStruct((n_pad, HW), x.dtype),
        grid=grid,
        in_specs=[
            pl.BlockSpec(memory_space=pltpu.MemorySpace.SMEM),   # weights
            pl.BlockSpec(memory_space=pltpu.MemorySpace.SMEM),   # bias
            pl.BlockSpec((tn, C * HW), lambda n: (n, 0)),        # x (flat, lane-dense)
        ],
        out_specs=pl.BlockSpec((tn, HW), lambda n: (n, 0)),      # dense 2-D output
        compiler_params=pltpu.CompilerParams(
            dimension_semantics=("parallel",),
            vmem_limit_bytes=vmem_limit,
        ),
    )(w_flat, bias.astype(jnp.float32), x_flat)
    return out[:N].reshape(N, 1, H, W)


if __name__ == "__main__":
    N, C, H, W = 2, 4, 16, 16
    key = jax.random.PRNGKey(0)
    kx, kw, kb = jax.random.split(key, 3)

    x = jax.random.normal(kx, (N, C, H, W), jnp.float32)

    # Deterministic parameter init mimicking PyTorch's default uniform bound.
    # ConvTranspose2d weight shape: (in_channels, out_channels, kH, kW) = (C, 1, 3, 3)
    bound = 1.0 / math.sqrt(C * 3 * 3)
    weight = jax.random.uniform(kw, (C, 1, 3, 3), jnp.float32, -bound, bound)
    bias = jax.random.uniform(kb, (1,), jnp.float32, -bound, bound)

    out = jax.block_until_ready(spatial_gate(x, weight, bias))
    assert out.shape == (N, 1, H, W)

    # Sanity check against XLA's convolution (same flip/transpose identity).
    w_ref = jnp.flip(weight[:, 0], axis=(-2, -1))[None]      # (1, C, 3, 3) OIHW
    ref = jax.lax.conv_general_dilated(
        x, w_ref, window_strides=(1, 1), padding=((1, 1), (1, 1)),
        dimension_numbers=("NCHW", "OIHW", "NCHW"))
    ref = jax.nn.sigmoid(ref + bias[0])
    assert jnp.allclose(out, ref, atol=1e-5, rtol=1e-5), float(jnp.max(jnp.abs(out - ref)))

    print("KERNEL_OK")
</pallas_src>

<mosaic_0001>
module attributes {stable_mosaic.version = 11 : i64} {
  func.func @_spatial_gate_kernel(%arg0: i32, %arg1: memref<36xf32, #tpu.memory_space<smem>>, %arg2: memref<1xf32, #tpu.memory_space<smem>>, %arg3: memref<8x1024xf32, #tpu.memory_space<vmem>>, %arg4: memref<8x256xf32, #tpu.memory_space<vmem>>) attributes {dimension_semantics = [#tpu.dimension_semantics<parallel>], iteration_bounds = array<i64: 1>, scalar_prefetch = 0 : i64, scratch_operands = 0 : i64, tpu.core_type = #tpu.core_type<tc>, window_params = [{transform_indices = @transform_0, window_bounds = array<i64: 36>}, {transform_indices = @transform_1, window_bounds = array<i64: 1>}, {transform_indices = @transform_2, window_bounds = array<i64: 8, 1024>}, {transform_indices = @transform_3, window_bounds = array<i64: 8, 256>}]} {
    %c0 = arith.constant 0 : index
    %c0_0 = arith.constant 0 : index
    %0 = vector.load %arg3[%c0, %c0_0] : memref<8x1024xf32, #tpu.memory_space<vmem>>, vector<8x256xf32>
    %c0_1 = arith.constant 0 : index
    %c256 = arith.constant 256 : index
    %1 = vector.load %arg3[%c0_1, %c256] : memref<8x1024xf32, #tpu.memory_space<vmem>>, vector<8x256xf32>
    %c0_2 = arith.constant 0 : index
    %c512 = arith.constant 512 : index
    %2 = vector.load %arg3[%c0_2, %c512] : memref<8x1024xf32, #tpu.memory_space<vmem>>, vector<8x256xf32>
    %c0_3 = arith.constant 0 : index
    %c768 = arith.constant 768 : index
    %3 = vector.load %arg3[%c0_3, %c768] : memref<8x1024xf32, #tpu.memory_space<vmem>>, vector<8x256xf32>
    %4 = tpu.iota {dimensions = array<i32: 1>} : vector<8x256xi32>
    %c15_i32 = arith.constant 15 : i32
    %5 = vector.broadcast %c15_i32 : i32 to vector<8x256xi32>
    %6 = arith.andi %4, %5 : vector<8x256xi32>
    %c0_i32 = arith.constant 0 : i32
    %7 = vector.broadcast %c0_i32 : i32 to vector<8x256xi32>
    %8 = arith.cmpi ne, %6, %7 : vector<8x256xi32>
    %c15_i32_4 = arith.constant 15 : i32
    %9 = vector.broadcast %c15_i32_4 : i32 to vector<8x256xi32>
    %10 = arith.cmpi ne, %6, %9 : vector<8x256xi32>
    %c16_i32 = arith.constant 16 : i32
    %11 = vector.broadcast %c16_i32 : i32 to vector<8x256xi32>
    %12 = arith.cmpi sge, %4, %11 : vector<8x256xi32>
    %c240_i32 = arith.constant 240 : i32
    %13 = vector.broadcast %c240_i32 : i32 to vector<8x256xi32>
    %14 = arith.cmpi slt, %4, %13 : vector<8x256xi32>
    %c0_5 = arith.constant 0 : index
    %15 = memref.load %arg2[%c0_5] : memref<1xf32, #tpu.memory_space<smem>>
    %16 = vector.broadcast %15 : f32 to vector<8x256xf32>
    %c0_6 = arith.constant 0 : index
    %17 = memref.load %arg1[%c0_6] : memref<36xf32, #tpu.memory_space<smem>>
    %18 = vector.broadcast %17 : f32 to vector<8x256xf32>
    %19 = arith.mulf %0, %18 : vector<8x256xf32>
    %c9 = arith.constant 9 : index
    %20 = memref.load %arg1[%c9] : memref<36xf32, #tpu.memory_space<smem>>
    %21 = vector.broadcast %20 : f32 to vector<8x256xf32>
    %22 = arith.mulf %1, %21 : vector<8x256xf32>
    %23 = arith.addf %19, %22 : vector<8x256xf32>
    %c18 = arith.constant 18 : index
    %24 = memref.load %arg1[%c18] : memref<36xf32, #tpu.memory_space<smem>>
    %25 = vector.broadcast %24 : f32 to vector<8x256xf32>
    %26 = arith.mulf %2, %25 : vector<8x256xf32>
    %27 = arith.addf %23, %26 : vector<8x256xf32>
    %c27 = arith.constant 27 : index
    %28 = memref.load %arg1[%c27] : memref<36xf32, #tpu.memory_space<smem>>
    %29 = vector.broadcast %28 : f32 to vector<8x256xf32>
    %30 = arith.mulf %3, %29 : vector<8x256xf32>
    %31 = arith.addf %27, %30 : vector<8x256xf32>
    %c17_i32 = arith.constant 17 : i32
    %32 = tpu.dynamic_rotate %31 by %c17_i32 dim 1 : vector<8x256xf32>, i32 -> vector<8x256xf32>
    %33 = arith.andi %12, %8 : vector<8x256xi1>
    %cst = arith.constant 0.000000e+00 : f32
    %34 = vector.broadcast %cst : f32 to vector<8x256xf32>
    %35 = arith.select %33, %32, %34 : vector<8x256xi1>, vector<8x256xf32>
    %36 = arith.addf %16, %35 : vector<8x256xf32>
    %c1 = arith.constant 1 : index
    %37 = memref.load %arg1[%c1] : memref<36xf32, #tpu.memory_space<smem>>
    %38 = vector.broadcast %37 : f32 to vector<8x256xf32>
    %39 = arith.mulf %0, %38 : vector<8x256xf32>
    %c10 = arith.constant 10 : index
    %40 = memref.load %arg1[%c10] : memref<36xf32, #tpu.memory_space<smem>>
    %41 = vector.broadcast %40 : f32 to vector<8x256xf32>
    %42 = arith.mulf %1, %41 : vector<8x256xf32>
    %43 = arith.addf %39, %42 : vector<8x256xf32>
    %c19 = arith.constant 19 : index
    %44 = memref.load %arg1[%c19] : memref<36xf32, #tpu.memory_space<smem>>
    %45 = vector.broadcast %44 : f32 to vector<8x256xf32>
    %46 = arith.mulf %2, %45 : vector<8x256xf32>
    %47 = arith.addf %43, %46 : vector<8x256xf32>
    %c28 = arith.constant 28 : index
    %48 = memref.load %arg1[%c28] : memref<36xf32, #tpu.memory_space<smem>>
    %49 = vector.broadcast %48 : f32 to vector<8x256xf32>
    %50 = arith.mulf %3, %49 : vector<8x256xf32>
    %51 = arith.addf %47, %50 : vector<8x256xf32>
    %c16_i32_7 = arith.constant 16 : i32
    %52 = tpu.dynamic_rotate %51 by %c16_i32_7 dim 1 : vector<8x256xf32>, i32 -> vector<8x256xf32>
    %cst_8 = arith.constant 0.000000e+00 : f32
    %53 = vector.broadcast %cst_8 : f32 to vector<8x256xf32>
    %54 = arith.select %12, %52, %53 : vector<8x256xi1>, vector<8x256xf32>
    %55 = arith.addf %36, %54 : vector<8x256xf32>
    %c2 = arith.constant 2 : index
    %56 = memref.load %arg1[%c2] : memref<36xf32, #tpu.memory_space<smem>>
    %57 = vector.broadcast %56 : f32 to vector<8x256xf32>
    %58 = arith.mulf %0, %57 : vector<8x256xf32>
    %c11 = arith.constant 11 : index
    %59 = memref.load %arg1[%c11] : memref<36xf32, #tpu.memory_space<smem>>
    %60 = vector.broadcast %59 : f32 to vector<8x256xf32>
    %61 = arith.mulf %1, %60 : vector<8x256xf32>
    %62 = arith.addf %58, %61 : vector<8x256xf32>
    %c20 = arith.constant 20 : index
    %63 = memref.load %arg1[%c20] : memref<36xf32, #tpu.memory_space<smem>>
    %64 = vector.broadcast %63 : f32 to vector<8x256xf32>
    %65 = arith.mulf %2, %64 : vector<8x256xf32>
    %66 = arith.addf %62, %65 : vector<8x256xf32>
    %c29 = arith.constant 29 : index
    %67 = memref.load %arg1[%c29] : memref<36xf32, #tpu.memory_space<smem>>
    %68 = vector.broadcast %67 : f32 to vector<8x256xf32>
    %69 = arith.mulf %3, %68 : vector<8x256xf32>
    %70 = arith.addf %66, %69 : vector<8x256xf32>
    %c15_i32_9 = arith.constant 15 : i32
    %71 = tpu.dynamic_rotate %70 by %c15_i32_9 dim 1 : vector<8x256xf32>, i32 -> vector<8x256xf32>
    %72 = arith.andi %12, %10 : vector<8x256xi1>
    %cst_10 = arith.constant 0.000000e+00 : f32
    %73 = vector.broadcast %cst_10 : f32 to vector<8x256xf32>
    %74 = arith.select %72, %71, %73 : vector<8x256xi1>, vector<8x256xf32>
    %75 = arith.addf %55, %74 : vector<8x256xf32>
    %c3 = arith.constant 3 : index
    %76 = memref.load %arg1[%c3] : memref<36xf32, #tpu.memory_space<smem>>
    %77 = vector.broadcast %76 : f32 to vector<8x256xf32>
    %78 = arith.mulf %0, %77 : vector<8x256xf32>
    %c12 = arith.constant 12 : index
    %79 = memref.load %arg1[%c12] : memref<36xf32, #tpu.memory_space<smem>>
    %80 = vector.broadcast %79 : f32 to vector<8x256xf32>
    %81 = arith.mulf %1, %80 : vector<8x256xf32>
    %82 = arith.addf %78, %81 : vector<8x256xf32>
    %c21 = arith.constant 21 : index
    %83 = memref.load %arg1[%c21] : memref<36xf32, #tpu.memory_space<smem>>
    %84 = vector.broadcast %83 : f32 to vector<8x256xf32>
    %85 = arith.mulf %2, %84 : vector<8x256xf32>
    %86 = arith.addf %82, %85 : vector<8x256xf32>
    %c30 = arith.constant 30 : index
    %87 = memref.load %arg1[%c30] : memref<36xf32, #tpu.memory_space<smem>>
    %88 = vector.broadcast %87 : f32 to vector<8x256xf32>
    %89 = arith.mulf %3, %88 : vector<8x256xf32>
    %90 = arith.addf %86, %89 : vector<8x256xf32>
    %c1_i32 = arith.constant 1 : i32
    %91 = tpu.dynamic_rotate %90 by %c1_i32 dim 1 : vector<8x256xf32>, i32 -> vector<8x256xf32>
    %cst_11 = arith.constant 0.000000e+00 : f32
    %92 = vector.broadcast %cst_11 : f32 to vector<8x256xf32>
    %93 = arith.select %8, %91, %92 : vector<8x256xi1>, vector<8x256xf32>
    %94 = arith.addf %75, %93 : vector<8x256xf32>
    %c4 = arith.constant 4 : index
    %95 = memref.load %arg1[%c4] : memref<36xf32, #tpu.memory_space<smem>>
    %96 = vector.broadcast %95 : f32 to vector<8x256xf32>
    %97 = arith.mulf %0, %96 : vector<8x256xf32>
    %c13 = arith.constant 13 : index
    %98 = memref.load %arg1[%c13] : memref<36xf32, #tpu.memory_space<smem>>
    %99 = vector.broadcast %98 : f32 to vector<8x256xf32>
    %100 = arith.mulf %1, %99 : vector<8x256xf32>
    %101 = arith.addf %97, %100 : vector<8x256xf32>
    %c22 = arith.constant 22 : index
    %102 = memref.load %arg1[%c22] : memref<36xf32, #tpu.memory_space<smem>>
    %103 = vector.broadcast %102 : f32 to vector<8x256xf32>
    %104 = arith.mulf %2, %103 : vector<8x256xf32>
    %105 = arith.addf %101, %104 : vector<8x256xf32>
    %c31 = arith.constant 31 : index
    %106 = memref.load %arg1[%c31] : memref<36xf32, #tpu.memory_space<smem>>
    %107 = vector.broadcast %106 : f32 to vector<8x256xf32>
    %108 = arith.mulf %3, %107 : vector<8x256xf32>
    %109 = arith.addf %105, %108 : vector<8x256xf32>
    %110 = arith.addf %94, %109 : vector<8x256xf32>
    %c5 = arith.constant 5 : index
    %111 = memref.load %arg1[%c5] : memref<36xf32, #tpu.memory_space<smem>>
    %112 = vector.broadcast %111 : f32 to vector<8x256xf32>
    %113 = arith.mulf %0, %112 : vector<8x256xf32>
    %c14 = arith.constant 14 : index
    %114 = memref.load %arg1[%c14] : memref<36xf32, #tpu.memory_space<smem>>
    %115 = vector.broadcast %114 : f32 to vector<8x256xf32>
    %116 = arith.mulf %1, %115 : vector<8x256xf32>
    %117 = arith.addf %113, %116 : vector<8x256xf32>
    %c23 = arith.constant 23 : index
    %118 = memref.load %arg1[%c23] : memref<36xf32, #tpu.memory_space<smem>>
    %119 = vector.broadcast %118 : f32 to vector<8x256xf32>
    %120 = arith.mulf %2, %119 : vector<8x256xf32>
    %121 = arith.addf %117, %120 : vector<8x256xf32>
    %c32 = arith.constant 32 : index
    %122 = memref.load %arg1[%c32] : memref<36xf32, #tpu.memory_space<smem>>
    %123 = vector.broadcast %122 : f32 to vector<8x256xf32>
    %124 = arith.mulf %3, %123 : vector<8x256xf32>
    %125 = arith.addf %121, %124 : vector<8x256xf32>
    %c255_i32 = arith.constant 255 : i32
    %126 = tpu.dynamic_rotate %125 by %c255_i32 dim 1 : vector<8x256xf32>, i32 -> vector<8x256xf32>
    %cst_12 = arith.constant 0.000000e+00 : f32
    %127 = vector.broadcast %cst_12 : f32 to vector<8x256xf32>
    %128 = arith.select %10, %126, %127 : vector<8x256xi1>, vector<8x256xf32>
    %129 = arith.addf %110, %128 : vector<8x256xf32>
    %c6 = arith.constant 6 : index
    %130 = memref.load %arg1[%c6] : memref<36xf32, #tpu.memory_space<smem>>
    %131 = vector.broadcast %130 : f32 to vector<8x256xf32>
    %132 = arith.mulf %0, %131 : vector<8x256xf32>
    %c15 = arith.constant 15 : index
    %133 = memref.load %arg1[%c15] : memref<36xf32, #tpu.memory_space<smem>>
    %134 = vector.broadcast %133 : f32 to vector<8x256xf32>
    %135 = arith.mulf %1, %134 : vector<8x256xf32>
    %136 = arith.addf %132, %135 : vector<8x256xf32>
    %c24 = arith.constant 24 : index
    %137 = memref.load %arg1[%c24] : memref<36xf32, #tpu.memory_space<smem>>
    %138 = vector.broadcast %137 : f32 to vector<8x256xf32>
    %139 = arith.mulf %2, %138 : vector<8x256xf32>
    %140 = arith.addf %136, %139 : vector<8x256xf32>
    %c33 = arith.constant 33 : index
    %141 = memref.load %arg1[%c33] : memref<36xf32, #tpu.memory_space<smem>>
    %142 = vector.broadcast %141 : f32 to vector<8x256xf32>
    %143 = arith.mulf %3, %142 : vector<8x256xf32>
    %144 = arith.addf %140, %143 : vector<8x256xf32>
    %c241_i32 = arith.constant 241 : i32
    %145 = tpu.dynamic_rotate %144 by %c241_i32 dim 1 : vector<8x256xf32>, i32 -> vector<8x256xf32>
    %146 = arith.andi %14, %8 : vector<8x256xi1>
    %cst_13 = arith.constant 0.000000e+00 : f32
    %147 = vector.broadcast %cst_13 : f32 to vector<8x256xf32>
    %148 = arith.select %146, %145, %147 : vector<8x256xi1>, vector<8x256xf32>
    %149 = arith.addf %129, %148 : vector<8x256xf32>
    %c7 = arith.constant 7 : index
    %150 = memref.load %arg1[%c7] : memref<36xf32, #tpu.memory_space<smem>>
    %151 = vector.broadcast %150 : f32 to vector<8x256xf32>
    %152 = arith.mulf %0, %151 : vector<8x256xf32>
    %c16 = arith.constant 16 : index
    %153 = memref.load %arg1[%c16] : memref<36xf32, #tpu.memory_space<smem>>
    %154 = vector.broadcast %153 : f32 to vector<8x256xf32>
    %155 = arith.mulf %1, %154 : vector<8x256xf32>
    %156 = arith.addf %152, %155 : vector<8x256xf32>
    %c25 = arith.constant 25 : index
    %157 = memref.load %arg1[%c25] : memref<36xf32, #tpu.memory_space<smem>>
    %158 = vector.broadcast %157 : f32 to vector<8x256xf32>
    %159 = arith.mulf %2, %158 : vector<8x256xf32>
    %160 = arith.addf %156, %159 : vector<8x256xf32>
    %c34 = arith.constant 34 : index
    %161 = memref.load %arg1[%c34] : memref<36xf32, #tpu.memory_space<smem>>
    %162 = vector.broadcast %161 : f32 to vector<8x256xf32>
    %163 = arith.mulf %3, %162 : vector<8x256xf32>
    %164 = arith.addf %160, %163 : vector<8x256xf32>
    %c240_i32_14 = arith.constant 240 : i32
    %165 = tpu.dynamic_rotate %164 by %c240_i32_14 dim 1 : vector<8x256xf32>, i32 -> vector<8x256xf32>
    %cst_15 = arith.constant 0.000000e+00 : f32
    %166 = vector.broadcast %cst_15 : f32 to vector<8x256xf32>
    %167 = arith.select %14, %165, %166 : vector<8x256xi1>, vector<8x256xf32>
    %168 = arith.addf %149, %167 : vector<8x256xf32>
    %c8 = arith.constant 8 : index
    %169 = memref.load %arg1[%c8] : memref<36xf32, #tpu.memory_space<smem>>
    %170 = vector.broadcast %169 : f32 to vector<8x256xf32>
    %171 = arith.mulf %0, %170 : vector<8x256xf32>
    %c17 = arith.constant 17 : index
    %172 = memref.load %arg1[%c17] : memref<36xf32, #tpu.memory_space<smem>>
    %173 = vector.broadcast %172 : f32 to vector<8x256xf32>
    %174 = arith.mulf %1, %173 : vector<8x256xf32>
    %175 = arith.addf %171, %174 : vector<8x256xf32>
    %c26 = arith.constant 26 : index
    %176 = memref.load %arg1[%c26] : memref<36xf32, #tpu.memory_space<smem>>
    %177 = vector.broadcast %176 : f32 to vector<8x256xf32>
    %178 = arith.mulf %2, %177 : vector<8x256xf32>
    %179 = arith.addf %175, %178 : vector<8x256xf32>
    %c35 = arith.constant 35 : index
    %180 = memref.load %arg1[%c35] : memref<36xf32, #tpu.memory_space<smem>>
    %181 = vector.broadcast %180 : f32 to vector<8x256xf32>
    %182 = arith.mulf %3, %181 : vector<8x256xf32>
    %183 = arith.addf %179, %182 : vector<8x256xf32>
    %c239_i32 = arith.constant 239 : i32
    %184 = tpu.dynamic_rotate %183 by %c239_i32 dim 1 : vector<8x256xf32>, i32 -> vector<8x256xf32>
    %185 = arith.andi %14, %10 : vector<8x256xi1>
    %cst_16 = arith.constant 0.000000e+00 : f32
    %186 = vector.broadcast %cst_16 : f32 to vector<8x256xf32>
    %187 = arith.select %185, %184, %186 : vector<8x256xi1>, vector<8x256xf32>
    %188 = arith.addf %168, %187 : vector<8x256xf32>
    %189 = arith.negf %188 : vector<8x256xf32>
    %190 = math.exp %189 : vector<8x256xf32>
    %cst_17 = arith.constant 1.000000e+00 : f32
    %191 = vector.broadcast %cst_17 : f32 to vector<8x256xf32>
    %192 = arith.addf %191, %190 : vector<8x256xf32>
    %193 = arith.divf %191, %192 : vector<8x256xf32>
    %c0_18 = arith.constant 0 : index
    %c0_19 = arith.constant 0 : index
    %194 = vector.load %arg4[%c0_18, %c0_19] : memref<8x256xf32, #tpu.memory_space<vmem>>, vector<8x256xf32>
    tpu.vector_store %arg4[%c0_18, %c0_19], %193 {strides = array<i32>} : memref<8x256xf32, #tpu.memory_space<vmem>>, vector<8x256xf32>,
    return
  }
  func.func @transform_0(%arg0: i32) -> i32 {
    %c0_i32 = arith.constant 0 : i32
    %c0_i32_0 = arith.constant 0 : i32
    return %c0_i32 : i32
  }
  func.func @transform_1(%arg0: i32) -> i32 {
    %c0_i32 = arith.constant 0 : i32
    %c0_i32_0 = arith.constant 0 : i32
    return %c0_i32 : i32
  }
  func.func @transform_2(%arg0: i32) -> (i32, i32) {
    %c0_i32 = arith.constant 0 : i32
    %c0_i32_0 = arith.constant 0 : i32
    return %arg0, %c0_i32 : i32, i32
  }
  func.func @transform_3(%arg0: i32) -> (i32, i32) {
    %c0_i32 = arith.constant 0 : i32
    %c0_i32_0 = arith.constant 0 : i32
    return %arg0, %c0_i32 : i32, i32
  }
}

</mosaic_0001>

<llo_original>
// kernel: tpu_custom_call.1
$region0: #{tpu_custom_call.1}
  #allocation0 [shape = 'u32[]', space=smem, size = 0x4, offset = 0x4, fixed_abs, tag = 'smem constant byte address 0x4 - core index']
  #allocation1 [shape = 'u32[72,128]{1,0:T(1,128)}', space=vmem, size = 0x9000, scoped, tag = 'internal scratch']
  #allocation2 [shape = 'f32[1]{0:T(128)S(6)}', space=smem, size = 0x200, scoped, tag = 'scoped memory for tpu_custom_call.1']
  %s0 = inlined_call_operand.vmem [shape: f32[36], index: 0, kind: input, shape index: {}]
  %s1 = inlined_call_operand.<no memory space> [shape: f32[1], index: 1, kind: input, shape index: {}]
  %s2 = inlined_call_operand.hbm [shape: f32[8,1024], index: 2, kind: input, shape index: {}]
  %s3 = inlined_call_operand.hbm [shape: f32[8,256], index: 3, kind: output, shape index: {}]
  %s4 = sld [smem:[#allocation0]]
  $region30: #{tpu_custom_call.1} parent=0
    _
  %s6 = ssub.s32 1, %s4
  %s7 = scalar_select 0, %s6, %s4
  %8 = sst [smem:[#allocation2]] %s1
  $region1: #{tpu_custom_call.1} parent=0
    #allocation3 [shape = 'u8[512]{0}', space=smem, size = 0x200, scoped, tag = 'input window, operand 0, single buffered']
    #allocation4 [shape = 's32[1]{0}', space=sflag, size = 0x4, scoped, tag = 'scoped memory for tpu_custom_call.1']
    #allocation5 [shape = 's32[1]{0}', space=sflag, size = 0x4, scoped, tag = 'scoped memory for tpu_custom_call.1']
    #allocation6 [shape = 's32[1]{0}', space=sflag, size = 0x4, scoped, tag = 'scoped memory for tpu_custom_call.1']
    #allocation7 [shape = 'u8[32768]{0}', space=vmem, size = 0x8000, scoped, tag = 'input window, operand 2, single buffered']
    #allocation8 [shape = 'u8[8192]{0}', space=vmem, size = 0x2000, scoped, tag = 'output window, operand 0, single buffered']
    %9 = vsyncpa [#allocation6], 0
    %10 = vsyncpa [#allocation4], 0
    %11 = vsyncpa [#allocation5], 0
    // Predicated region
    $region2: #{tpu_custom_call.1} parent=1 // pred_check
      _
    $region3: #{tpu_custom_call.1} parent=1 // pred_check_branch
      %13 = sbr.rel (0) target = $region5
    $region4: #{tpu_custom_call.1} parent=1 // pred_region
      %15 = vsyncadd [#allocation6], 0
      %s17 = sshll.u32 %s0, 4
      %s18 = int_to_ptr.vmem [resolvable:$true] %s17
      %20 = dma.vmem_to_smem %s18, 16, [#allocation3], [#allocation6]
    $region5: #{tpu_custom_call.1} parent=1 // pred_fallthru
      _
    // Predicated region
    $region6: #{tpu_custom_call.1} parent=1 // pred_check
      _
    $region7: #{tpu_custom_call.1} parent=1 // pred_check_branch
      %22 = sbr.rel (0) target = $region9
    $region8: #{tpu_custom_call.1} parent=1 // pred_region
      _
    $region9: #{tpu_custom_call.1} parent=1 // pred_fallthru
      _
    // Predicated region
    $region10: #{tpu_custom_call.1} parent=1 // pred_check
      _
    $region11: #{tpu_custom_call.1} parent=1 // pred_check_branch
      %24 = sbr.rel (0) target = $region13
    $region12: #{tpu_custom_call.1} parent=1 // pred_region
      %26 = vsyncadd [#allocation4], 0
      %s28 = sshll.u32 %s2, 4
      %s29 = int_to_ptr.hbm [resolvable:$true] %s28
      %s30 = sshll.u32 [#allocation7], 4
      %s31 = int_to_ptr.vmem [resolvable:$true] %s30
      %33 = dma.hbm_to_vmem [thread:$0]  %s29, 1024, %s31, [#allocation4]
    $region13: #{tpu_custom_call.1} parent=1 // pred_fallthru
      _
    // Predicated region
    $region14: #{tpu_custom_call.1} parent=1 // pred_check
      _
    $region15: #{tpu_custom_call.1} parent=1 // pred_check_branch
      %35 = sbr.rel (0) target = $region17
    $region16: #{tpu_custom_call.1} parent=1 // pred_region
      %37 = dma.done [#allocation6], 16
    $region17: #{tpu_custom_call.1} parent=1 // pred_fallthru
      _
    // Predicated region
    $region18: #{tpu_custom_call.1} parent=1 // pred_check
      _
    $region19: #{tpu_custom_call.1} parent=1 // pred_check_branch
      %39 = sbr.rel (0) target = $region21
    $region20: #{tpu_custom_call.1} parent=1 // pred_region
      %41 = dma.done [#allocation4], 1024
    $region21: #{tpu_custom_call.1} parent=1 // pred_fallthru
      _
    %42 = sfence
    %v43 = vld [vmem:[#allocation7] sm:$0xff]
    %v44 = vld [vmem:[#allocation7 + $0x8] sm:$0xff]
    %v45 = vld [vmem:[#allocation7 + $0x10] sm:$0xff]
    %v46 = vld [vmem:[#allocation7 + $0x18] sm:$0xff]
    %v47 = vld [vmem:[#allocation7 + $0x20] sm:$0xff]
    %v48 = vld [vmem:[#allocation7 + $0x28] sm:$0xff]
    %v49 = vld [vmem:[#allocation7 + $0x30] sm:$0xff]
    %v50 = vld [vmem:[#allocation7 + $0x38] sm:$0xff]
    %v51 = vlaneseq
    %v52 = vand.u32 %v51, 127
    %v53 = vadd.s32 %v52, 128
    %v54 = vand.u32 %v52, 15
    %v55 = vand.u32 %v53, 15
    %vm56 = vcmp.ne.s32.totalorder %v54, 0
    %vm57 = vcmp.ne.s32.totalorder %v55, 0
    %vm58 = vcmp.ne.s32.totalorder %v54, 15
    %vm59 = vcmp.ne.s32.totalorder %v55, 15
    %vm60 = vcmp.ge.s32.totalorder %v52, 16
    %vm61 = vcmp.ge.s32.totalorder %v53, 16
    %vm62 = vcmp.lt.s32.totalorder %v52, 240
    %vm63 = vcmp.lt.s32.totalorder %v53, 240
    %s64 = sld [smem:[#allocation2]]
    %v65 = vstv %s64
    %s66 = sld [smem:[#allocation3]]
    %v67 = vstv %s66
    %v68 = vmul.f32 %v43, %v67
    %v69 = vmul.f32 %v44, %v67
    %s70 = sld [smem:[#allocation3 + $0x9]]
    %v71 = vstv %s70
    %v72 = vmul.f32 %v45, %v71
    %v73 = vmul.f32 %v46, %v71
    %v74 = vadd.f32 %v68, %v72
    %v75 = vadd.f32 %v69, %v73
    %s76 = sld [smem:[#allocation3 + $0x12]]
    %v77 = vstv %s76
    %v78 = vmul.f32 %v47, %v77
    %v79 = vmul.f32 %v48, %v77
    %v80 = vadd.f32 %v74, %v78
    %v81 = vadd.f32 %v75, %v79
    %s82 = sld [smem:[#allocation3 + $0x1b]]
    %v83 = vstv %s82
    %v84 = vmul.f32 %v49, %v83
    %v85 = vmul.f32 %v50, %v83
    %v86 = vadd.f32 %v80, %v84
    %v87 = vadd.f32 %v81, %v85
    %88 = vrot.lane.b32.xlu0 %v86, 17
    %v89 = vpop.permute.xlu0 %88
    %90 = vrot.lane.b32.xlu0 %v87, 17
    %v91 = vpop.permute.xlu0 %90
    %vm92 = vcmp.lt.s32.totalorder %v52, 17
    %v93 = vsel %vm92, %v89, %v91
    %v94 = vsel %vm92, %v91, %v89
    %vm95 = vmand %vm60, %vm56
    %vm96 = vmand %vm61, %vm57
    %v97 = vsel %vm95, %v94, 0.0
    %v98 = vsel %vm96, %v93, 0.0
    %v99 = vadd.f32 %v65, %v97
    %v100 = vadd.f32 %v65, %v98
    %s101 = sld [smem:[#allocation3 + $0x1]]
    %v102 = vstv %s101
    %v103 = vmul.f32 %v43, %v102
    %v104 = vmul.f32 %v44, %v102
    %s105 = sld [smem:[#allocation3 + $0xa]]
    %v106 = vstv %s105
    %v107 = vmul.f32 %v45, %v106
    %v108 = vmul.f32 %v46, %v106
    %v109 = vadd.f32 %v103, %v107
    %v110 = vadd.f32 %v104, %v108
    %s111 = sld [smem:[#allocation3 + $0x13]]
    %v112 = vstv %s111
    %v113 = vmul.f32 %v47, %v112
    %v114 = vmul.f32 %v48, %v112
    %v115 = vadd.f32 %v109, %v113
    %v116 = vadd.f32 %v110, %v114
    %s117 = sld [smem:[#allocation3 + $0x1c]]
    %v118 = vstv %s117
    %v119 = vmul.f32 %v49, %v118
    %v120 = vmul.f32 %v50, %v118
    %v121 = vadd.f32 %v115, %v119
    %v122 = vadd.f32 %v116, %v120
    %123 = vrot.lane.b32.xlu0 %v121, 16
    %v124 = vpop.permute.xlu0 %123
    %125 = vrot.lane.b32.xlu0 %v122, 16
    %v126 = vpop.permute.xlu0 %125
    %vm127 = vcmp.lt.s32.totalorder %v52, 16
    %v128 = vsel %vm127, %v124, %v126
    %v129 = vsel %vm127, %v126, %v124
    %v130 = vsel %vm60, %v129, 0.0
    %v131 = vsel %vm61, %v128, 0.0
    %v132 = vadd.f32 %v99, %v130
    %v133 = vadd.f32 %v100, %v131
    %s134 = sld [smem:[#allocation3 + $0x2]]
    %v135 = vstv %s134
    %v136 = vmul.f32 %v43, %v135
    %v137 = vmul.f32 %v44, %v135
    %s138 = sld [smem:[#allocation3 + $0xb]]
    %v139 = vstv %s138
    %v140 = vmul.f32 %v45, %v139
    %v141 = vmul.f32 %v46, %v139
    %v142 = vadd.f32 %v136, %v140
    %v143 = vadd.f32 %v137, %v141
    %s144 = sld [smem:[#allocation3 + $0x14]]
    %v145 = vstv %s144
    %v146 = vmul.f32 %v47, %v145
    %v147 = vmul.f32 %v48, %v145
    %v148 = vadd.f32 %v142, %v146
    %v149 = vadd.f32 %v143, %v147
    %s150 = sld [smem:[#allocation3 + $0x1d]]
    %v151 = vstv %s150
    %v152 = vmul.f32 %v49, %v151
    %v153 = vmul.f32 %v50, %v151
    %v154 = vadd.f32 %v148, %v152
    %v155 = vadd.f32 %v149, %v153
    %156 = vrot.lane.b32.xlu0 %v154, 15
    %v157 = vpop.permute.xlu0 %156
    %158 = vrot.lane.b32.xlu0 %v155, 15
    %v159 = vpop.permute.xlu0 %158
    %vm160 = vcmp.lt.s32.totalorder %v52, 15
    %v161 = vsel %vm160, %v157, %v159
    %v162 = vsel %vm160, %v159, %v157
    %vm163 = vmand %vm60, %vm58
    %vm164 = vmand %vm61, %vm59
    %v165 = vsel %vm163, %v162, 0.0
    %v166 = vsel %vm164, %v161, 0.0
    %v167 = vadd.f32 %v132, %v165
    %v168 = vadd.f32 %v133, %v166
    %s169 = sld [smem:[#allocation3 + $0x3]]
    %v170 = vstv %s169
    %v171 = vmul.f32 %v43, %v170
    %v172 = vmul.f32 %v44, %v170
    %s173 = sld [smem:[#allocation3 + $0xc]]
    %v174 = vstv %s173
    %v175 = vmul.f32 %v45, %v174
    %v176 = vmul.f32 %v46, %v174
    %v177 = vadd.f32 %v171, %v175
    %v178 = vadd.f32 %v172, %v176
    %s179 = sld [smem:[#allocation3 + $0x15]]
    %v180 = vstv %s179
    %v181 = vmul.f32 %v47, %v180
    %v182 = vmul.f32 %v48, %v180
    %v183 = vadd.f32 %v177, %v181
    %v184 = vadd.f32 %v178, %v182
    %s185 = sld [smem:[#allocation3 + $0x1e]]
    %v186 = vstv %s185
    %v187 = vmul.f32 %v49, %v186
    %v188 = vmul.f32 %v50, %v186
    %v189 = vadd.f32 %v183, %v187
    %v190 = vadd.f32 %v184, %v188
    %191 = vrot.lane.b32.xlu0 %v189, 1
    %v192 = vpop.permute.xlu0 %191
    %193 = vrot.lane.b32.xlu0 %v190, 1
    %v194 = vpop.permute.xlu0 %193
    %vm195 = vcmp.lt.s32.totalorder %v52, 1
    %v196 = vsel %vm195, %v192, %v194
    %v197 = vsel %vm195, %v194, %v192
    %v198 = vsel %vm56, %v197, 0.0
    %v199 = vsel %vm57, %v196, 0.0
    %v200 = vadd.f32 %v167, %v198
    %v201 = vadd.f32 %v168, %v199
    %s202 = sld [smem:[#allocation3 + $0x4]]
    %v203 = vstv %s202
    %v204 = vmul.f32 %v43, %v203
    %v205 = vmul.f32 %v44, %v203
    %s206 = sld [smem:[#allocation3 + $0xd]]
    %v207 = vstv %s206
    %v208 = vmul.f32 %v45, %v207
    %v209 = vmul.f32 %v46, %v207
    %v210 = vadd.f32 %v204, %v208
    %v211 = vadd.f32 %v205, %v209
    %s212 = sld [smem:[#allocation3 + $0x16]]
    %v213 = vstv %s212
    %v214 = vmul.f32 %v47, %v213
    %v215 = vmul.f32 %v48, %v213
    %v216 = vadd.f32 %v210, %v214
    %v217 = vadd.f32 %v211, %v215
    %s218 = sld [smem:[#allocation3 + $0x1f]]
    %v219 = vstv %s218
    %v220 = vmul.f32 %v49, %v219
    %v221 = vmul.f32 %v50, %v219
    %v222 = vadd.f32 %v216, %v220
    %v223 = vadd.f32 %v217, %v221
    %v224 = vadd.f32 %v200, %v222
    %v225 = vadd.f32 %v201, %v223
    %s226 = sld [smem:[#allocation3 + $0x5]]
    %v227 = vstv %s226
    %v228 = vmul.f32 %v43, %v227
    %v229 = vmul.f32 %v44, %v227
    %s230 = sld [smem:[#allocation3 + $0xe]]
    %v231 = vstv %s230
    %v232 = vmul.f32 %v45, %v231
    %v233 = vmul.f32 %v46, %v231
    %v234 = vadd.f32 %v228, %v232
    %v235 = vadd.f32 %v229, %v233
    %s236 = sld [smem:[#allocation3 + $0x17]]
    %v237 = vstv %s236
    %v238 = vmul.f32 %v47, %v237
    %v239 = vmul.f32 %v48, %v237
    %v240 = vadd.f32 %v234, %v238
    %v241 = vadd.f32 %v235, %v239
    %s242 = sld [smem:[#allocation3 + $0x20]]
    %v243 = vstv %s242
    %v244 = vmul.f32 %v49, %v243
    %v245 = vmul.f32 %v50, %v243
    %v246 = vadd.f32 %v240, %v244
    %v247 = vadd.f32 %v241, %v245
    %248 = vrot.lane.b32.xlu0 %v246, 127
    %v249 = vpop.permute.xlu0 %248
    %250 = vrot.lane.b32.xlu0 %v247, 127
    %v251 = vpop.permute.xlu0 %250
    %vm252 = vcmp.lt.s32.totalorder %v52, 127
    %v253 = vsel %vm252, %v249, %v251
    %v254 = vsel %vm252, %v251, %v249
    %v255 = vsel %vm58, %v253, 0.0
    %v256 = vsel %vm59, %v254, 0.0
    %v257 = vadd.f32 %v224, %v255
    %v258 = vadd.f32 %v225, %v256
    %s259 = sld [smem:[#allocation3 + $0x6]]
    %v260 = vstv %s259
    %v261 = vmul.f32 %v43, %v260
    %v262 = vmul.f32 %v44, %v260
    %s263 = sld [smem:[#allocation3 + $0xf]]
    %v264 = vstv %s263
    %v265 = vmul.f32 %v45, %v264
    %v266 = vmul.f32 %v46, %v264
    %v267 = vadd.f32 %v261, %v265
    %v268 = vadd.f32 %v262, %v266
    %s269 = sld [smem:[#allocation3 + $0x18]]
    %v270 = vstv %s269
    %v271 = vmul.f32 %v47, %v270
    %v272 = vmul.f32 %v48, %v270
    %v273 = vadd.f32 %v267, %v271
    %v274 = vadd.f32 %v268, %v272
    %s275 = sld [smem:[#allocation3 + $0x21]]
    %v276 = vstv %s275
    %v277 = vmul.f32 %v49, %v276
    %v278 = vmul.f32 %v50, %v276
    %v279 = vadd.f32 %v273, %v277
    %v280 = vadd.f32 %v274, %v278
    %281 = vrot.lane.b32.xlu0 %v279, 113
    %v282 = vpop.permute.xlu0 %281
    %283 = vrot.lane.b32.xlu0 %v280, 113
    %v284 = vpop.permute.xlu0 %283
    %vm285 = vcmp.lt.s32.totalorder %v52, 113
    %v286 = vsel %vm285, %v282, %v284
    %v287 = vsel %vm285, %v284, %v282
    %vm288 = vmand %vm62, %vm56
    %vm289 = vmand %vm63, %vm57
    %v290 = vsel %vm288, %v286, 0.0
    %v291 = vsel %vm289, %v287, 0.0
    %v292 = vadd.f32 %v257, %v290
    %v293 = vadd.f32 %v258, %v291
    %s294 = sld [smem:[#allocation3 + $0x7]]
    %v295 = vstv %s294
    %v296 = vmul.f32 %v43, %v295
    %v297 = vmul.f32 %v44, %v295
    %s298 = sld [smem:[#allocation3 + $0x10]]
    %v299 = vstv %s298
    %v300 = vmul.f32 %v45, %v299
    %v301 = vmul.f32 %v46, %v299
    %v302 = vadd.f32 %v296, %v300
    %v303 = vadd.f32 %v297, %v301
    %s304 = sld [smem:[#allocation3 + $0x19]]
    %v305 = vstv %s304
    %v306 = vmul.f32 %v47, %v305
    %v307 = vmul.f32 %v48, %v305
    %v308 = vadd.f32 %v302, %v306
    %v309 = vadd.f32 %v303, %v307
    %s310 = sld [smem:[#allocation3 + $0x22]]
    %v311 = vstv %s310
    %v312 = vmul.f32 %v49, %v311
    %v313 = vmul.f32 %v50, %v311
    %v314 = vadd.f32 %v308, %v312
    %v315 = vadd.f32 %v309, %v313
    %316 = vrot.lane.b32.xlu0 %v314, 112
    %v317 = vpop.permute.xlu0 %316
    %318 = vrot.lane.b32.xlu0 %v315, 112
    %v319 = vpop.permute.xlu0 %318
    %vm320 = vcmp.lt.s32.totalorder %v52, 112
    %v321 = vsel %vm320, %v317, %v319
    %v322 = vsel %vm320, %v319, %v317
    %v323 = vsel %vm62, %v321, 0.0
    %v324 = vsel %vm63, %v322, 0.0
    %v325 = vadd.f32 %v292, %v323
    %v326 = vadd.f32 %v293, %v324
    %s327 = sld [smem:[#allocation3 + $0x8]]
    %v328 = vstv %s327
    %v329 = vmul.f32 %v43, %v328
    %v330 = vmul.f32 %v44, %v328
    %s331 = sld [smem:[#allocation3 + $0x11]]
    %v332 = vstv %s331
    %v333 = vmul.f32 %v45, %v332
    %v334 = vmul.f32 %v46, %v332
    %v335 = vadd.f32 %v329, %v333
    %v336 = vadd.f32 %v330, %v334
    %s337 = sld [smem:[#allocation3 + $0x1a]]
    %v338 = vstv %s337
    %v339 = vmul.f32 %v47, %v338
    %v340 = vmul.f32 %v48, %v338
    %v341 = vadd.f32 %v335, %v339
    %v342 = vadd.f32 %v336, %v340
    %s343 = sld [smem:[#allocation3 + $0x23]]
    %v344 = vstv %s343
    %v345 = vmul.f32 %v49, %v344
    %v346 = vmul.f32 %v50, %v344
    %v347 = vadd.f32 %v341, %v345
    %v348 = vadd.f32 %v342, %v346
    %349 = vrot.lane.b32.xlu0 %v347, 111
    %v350 = vpop.permute.xlu0 %349
    %351 = vrot.lane.b32.xlu0 %v348, 111
    %v352 = vpop.permute.xlu0 %351
    %vm353 = vcmp.lt.s32.totalorder %v52, 111
    %v354 = vsel %vm353, %v350, %v352
    %v355 = vsel %vm353, %v352, %v350
    %vm356 = vmand %vm62, %vm58
    %vm357 = vmand %vm63, %vm59
    %v358 = vsel %vm356, %v354, 0.0
    %v359 = vsel %vm357, %v355, 0.0
    %v360 = vadd.f32 %v325, %v358
    %v361 = vadd.f32 %v326, %v359
    %v362 = vxor.u32 %v360, 2147483648
    %v363 = vxor.u32 %v361, 2147483648
    %v364 = vmul.f32 %v362, 1.442695
    %v365 = vpow.pop %v364
    %v366 = vmul.f32 %v363, 1.442695
    %v367 = vpow.pop %v366
    %v368 = vadd.f32 %v365, 1.0
    %v369 = vadd.f32 %v367, 1.0
    %v370 = vrcp.pop %v368
    %v371 = vmul.f32 %v368, %v370
    %v372 = vsub.f32 1.0, %v371
    %v373 = vmul.f32 %v370, %v372
    %v374 = vadd.f32 %v370, %v373
    %vm375 = vweird.f32 %v368
    %vm376 = vweird.f32 %v370
    %vm377 = vmor %vm375, %vm376
    %v378 = vsel %vm377, %v370, %v374
    %v379 = vand.u32 2147483647, %v368
    %vm380 = vcmp.eq.f32.partialorder %v379, 8.507059e+37
    %v381 = vand.u32 %v368, 2147483648
    %v382 = vor.u32 1.1754944e-38, %v381
    %v383 = vsel %vm380, %v382, %v378
    %v384 = vmul.f32 1.0, %v383
    %v385 = vrcp.pop %v369
    %v386 = vmul.f32 %v369, %v385
    %v387 = vsub.f32 1.0, %v386
    %v388 = vmul.f32 %v385, %v387
    %v389 = vadd.f32 %v385, %v388
    %vm390 = vweird.f32 %v369
    %vm391 = vweird.f32 %v385
    %vm392 = vmor %vm390, %vm391
    %v393 = vsel %vm392, %v385, %v389
    %v394 = vand.u32 2147483647, %v369
    %vm395 = vcmp.eq.f32.partialorder %v394, 8.507059e+37
    %v396 = vand.u32 %v369, 2147483648
    %v397 = vor.u32 1.1754944e-38, %v396
    %v398 = vsel %vm395, %v397, %v393
    %v399 = vmul.f32 1.0, %v398
    %400 = vst [vmem:[#allocation8] sm:$0xff] %v384
    %401 = vst [vmem:[#allocation8 + $0x8] sm:$0xff] %v399
    // Predicated region
    $region22: #{tpu_custom_call.1} parent=1 // pred_check
      _
    $region23: #{tpu_custom_call.1} parent=1 // pred_check_branch
      %403 = sbr.rel (0) target = $region25
    $region24: #{tpu_custom_call.1} parent=1 // pred_region
      %405 = vsyncadd [#allocation5], 0
      %s407 = sshll.u32 [#allocation8], 4
      %s408 = int_to_ptr.vmem [resolvable:$true] %s407
      %s409 = sshll.u32 %s3, 4
      %s410 = int_to_ptr.hbm [resolvable:$true] %s409
      %412 = dma.vmem_to_hbm [thread:$0]  %s408, 256, %s410, [#allocation5]
    $region25: #{tpu_custom_call.1} parent=1 // pred_fallthru
      _
    // Predicated region
    $region26: #{tpu_custom_call.1} parent=1 // pred_check
      _
    $region27: #{tpu_custom_call.1} parent=1 // pred_check_branch
      %414 = sbr.rel (0) target = $region29
    $region28: #{tpu_custom_call.1} parent=1 // pred_region
      %416 = dma.done [#allocation5], 256
    $region29: #{tpu_custom_call.1} parent=1 // pred_fallthru
      _
    %417 = vsyncpa [#allocation4], 1
    %418 = vsyncpa [#allocation5], 1
    %419 = vsyncpa [#allocation6], 1

</llo_original>
